<compile_context>
chip_gen: v7x
topology: tpu7x:2x2x1
jax: 0.10.0
libtpu: 0.0.40
codegen_flags: <defaults>
</compile_context>

<pallas_src>
import jax
import jax.numpy as jnp
from jax.experimental import pallas as pl
from jax.experimental.pallas import tpu as pltpu

LANE = 128


def _wce_kernel(logits_ref, tgt_ref, ce_ref, acc_ref):
    """One spatial tile of one batch element.

    logits_ref: [C, tile_r, 128]   logits (classes = dense planes)
    tgt_ref:    [1, tile_r, 128]   int32 labels (padded lanes hold label == C)
    ce_ref:     [C, 128]           narrow output block (written on the last step only)
    acc_ref:    [C, tile_r, 128]   resident f32 CE accumulator (VMEM scratch)
    """
    r = pl.program_id(1)
    last = pl.num_programs(1) - 1
    C = logits_ref.shape[0]

    @pl.when(r == 0)
    def _():
        acc_ref[...] = jnp.zeros_like(acc_ref)

    x = logits_ref[...].astype(jnp.float32)        # [C, tile_r, 128]
    t = tgt_ref[0]                                 # [tile_r, 128] int32

    # Numerically stable log-sum-exp over classes, unrolled as elementwise ops
    # over C dense (sublane, lane) planes (C is a static Python int).
    m = x[0]
    for c in range(1, C):
        m = jnp.maximum(m, x[c])
    s = jnp.exp(x[0] - m)
    for c in range(1, C):
        s = s + jnp.exp(x[c] - m)
    lse = m + jnp.log(s)                           # [tile_r, 128]

    # Per-pixel CE = lse - x[target], folded into the per-class accumulate:
    # plane c receives (lse - x[c]) exactly where t == c.  Padded lanes have
    # t == C (out of range) so they never match; jnp.where is a select, so any
    # stale/NaN logits garbage in padded lanes cannot leak into the accumulator.
    for c in range(C):
        acc_ref[c] = acc_ref[c] + jnp.where(t == c, lse - x[c], 0.0)

    @pl.when(r == last)
    def _():
        # Fold the sublane (tile_r) axis once per batch element; output stays
        # lane-dense [C, 128] and is written back a single time.
        ce_ref[...] = jnp.sum(acc_ref[...], axis=1)


def cross_entropy_loss_weighted(inputs, targets, *,
                                target_block_bytes=6 << 20,
                                downcast_to_bf16=False):
    """inputs: [B, C, H, W] logits; targets: [B, H, W] int labels in [0, C)."""
    B, C, H, W = inputs.shape
    S = H * W

    if downcast_to_bf16:
        # Halves HBM read traffic on bandwidth-bound v5e/v6e; compute stays f32.
        inputs = inputs.astype(jnp.bfloat16)

    # ---- layout: [B, C, R, 128] dense lane planes -------------------------------
    S128 = pl.cdiv(S, LANE) * LANE
    R = S128 // LANE

    logits = inputs.reshape(B, C, S)
    if S128 != S:
        # Rare (H*W not a multiple of 128): one-time pad copy so the reshape is legal.
        logits = jnp.pad(logits, ((0, 0), (0, 0), (0, S128 - S)))
    logits = logits.reshape(B, C, R, LANE)

    elt = jnp.dtype(logits.dtype).itemsize

    # ---- spatial tile size (sublane rows per block), multiple of 8 when possible --
    if R <= 8:
        tile_r = R
    else:
        tile_r_target = max(8, (target_block_bytes // (elt * C * LANE)) // 8 * 8)
        tile_r = min(tile_r_target, (R // 8) * 8)
    grid_r = pl.cdiv(R, tile_r)
    r_pad = grid_r * tile_r

    # Targets are tiny (B*S int32): pad with the out-of-range label C so the ragged
    # tail needs no in-kernel masking, and reshape to the same plane layout.
    tgt = targets.astype(jnp.int32).reshape(B, S)
    pad = r_pad * LANE - S
    if pad:
        tgt = jnp.pad(tgt, ((0, 0), (0, pad)), constant_values=C)
    tgt = tgt.reshape(B, 1, r_pad, LANE)

    # ---- VMEM budget (double-buffered inputs + resident accumulator) --------------
    vmem_bytes = (2 * C * tile_r * LANE * elt      # logits blocks (double buffered)
                  + 2 * tile_r * LANE * 4          # target blocks
                  + C * tile_r * LANE * 4          # accumulator scratch
                  + 2 * C * LANE * 4               # narrow output block
                  + (2 << 20))                     # headroom
    vmem_limit = min(max(vmem_bytes, 32 << 20), 48 << 20)

    # TODO(synk): optional explicit 2-way spatial core-split for v7x when B is odd;
    # with B even the "parallel" batch axis already feeds both TensorCores.
    out_ce = pl.pallas_call(
        _wce_kernel,
        out_shape=jax.ShapeDtypeStruct((B, C, LANE), jnp.float32),
        grid_spec=pltpu.PrefetchScalarGridSpec(
            num_scalar_prefetch=0,
            grid=(B, grid_r),
            in_specs=[
                pl.BlockSpec((None, C, tile_r, LANE), lambda b, r: (b, 0, r, 0)),  # logits
                pl.BlockSpec((None, 1, tile_r, LANE), lambda b, r: (b, 0, r, 0)),  # targets
            ],
            out_specs=pl.BlockSpec((None, C, LANE), lambda b, r: (b, 0, 0)),       # CE sums
            scratch_shapes=[pltpu.VMEM((C, tile_r, LANE), jnp.float32)],
        ),
        compiler_params=pltpu.CompilerParams(
            dimension_semantics=("parallel", "arbitrary"),
            vmem_limit_bytes=vmem_limit,
        ),
    )(logits, tgt)

    # ---- tiny (B, C) finalization in plain JAX ------------------------------------
    ce_sum = jnp.sum(out_ce, axis=-1)                                     # (B, C)

    # Per-(b, c) pixel counts from the small int32 targets (no kernel accumulator).
    cls = jnp.arange(C, dtype=jnp.int32)
    cnt = jnp.sum(
        (targets.reshape(B, S, 1).astype(jnp.int32) == cls[None, None, :])
        .astype(jnp.float32), axis=1)                                     # (B, C)
    total = jnp.sum(cnt)                           # == B*H*W when all labels valid
    weights = 1.0 - cnt / total                                           # (B, C)

    numerator = jnp.sum(weights * ce_sum)
    denominator = jnp.sum(weights) * (B * H)       # matches torch: B * targets.size(1)
    return numerator / denominator


def cross_entropy_loss_weighted_ref(inputs, targets):
    """Pure-JAX reference mirroring the PyTorch module."""
    B, C, H, W = inputs.shape
    one_hot = jax.nn.one_hot(targets, C, axis=1, dtype=jnp.float32)       # (B,C,H,W)
    weights = 1.0 - jnp.sum(one_hot, axis=(2, 3), keepdims=True) / jnp.sum(one_hot)
    logp = jax.nn.log_softmax(inputs.astype(jnp.float32), axis=1)
    ce = -jnp.take_along_axis(logp, targets[:, None, :, :].astype(jnp.int32), axis=1)
    loss = ce * (weights * one_hot)
    return jnp.sum(loss) / (jnp.sum(weights) * B * H)


if __name__ == "__main__":
    key = jax.random.PRNGKey(0)
    k1, k2 = jax.random.split(key)

    B, C, H, W = 2, 3, 16, 16  # n_classes=3 (module default), small spatial
    inputs = jax.random.normal(k1, (B, C, H, W), dtype=jnp.float32)
    targets = jax.random.randint(k2, (B, H, W), minval=0, maxval=C, dtype=jnp.int32)

    loss = cross_entropy_loss_weighted(inputs, targets)
    jax.block_until_ready(loss)

    ref = cross_entropy_loss_weighted_ref(inputs, targets)
    assert jnp.allclose(loss, ref, rtol=1e-4, atol=1e-5), (loss, ref)

    print("KERNEL_OK")
</pallas_src>

<mosaic_0001>
module attributes {stable_mosaic.version = 11 : i64} {
  func.func @_wce_kernel(%arg0: i32, %arg1: i32, %arg2: memref<1x3x2x128xf32, #tpu.memory_space<vmem>>, %arg3: memref<1x1x2x128xi32, #tpu.memory_space<vmem>>, %arg4: memref<1x3x128xf32, #tpu.memory_space<vmem>>, %arg5: memref<3x2x128xf32, #tpu.memory_space<vmem>>) attributes {dimension_semantics = [#tpu.dimension_semantics<parallel>, #tpu.dimension_semantics<arbitrary>], iteration_bounds = array<i64: 2, 1>, scalar_prefetch = 0 : i64, scratch_operands = 1 : i64, tpu.core_type = #tpu.core_type<tc>, window_params = [{transform_indices = @transform_0, window_bounds = array<i64: 1, 3, 2, 128>}, {transform_indices = @transform_1, window_bounds = array<i64: 1, 1, 2, 128>}, {transform_indices = @transform_2, window_bounds = array<i64: 1, 3, 128>}]} {
    %c0_i32 = arith.constant 0 : i32
    %0 = arith.cmpi eq, %arg1, %c0_i32 : i32
    %1 = arith.extui %0 : i1 to i32
    %c0_i32_0 = arith.constant 0 : i32
    %2 = arith.cmpi ne, %1, %c0_i32_0 : i32
    scf.if %2 {
      %cst_29 = arith.constant 0.000000e+00 : f32
      %73 = vector.broadcast %cst_29 : f32 to vector<3x2x128xf32>
      %c0_30 = arith.constant 0 : index
      %c0_31 = arith.constant 0 : index
      %c0_32 = arith.constant 0 : index
      %74 = vector.load %arg5[%c0_30, %c0_31, %c0_32] : memref<3x2x128xf32, #tpu.memory_space<vmem>>, vector<3x2x128xf32>
      tpu.vector_store %arg5[%c0_30, %c0_31, %c0_32], %73 {strides = array<i32>} : memref<3x2x128xf32, #tpu.memory_space<vmem>>, vector<3x2x128xf32>,
    } else {
    }
    %c0 = arith.constant 0 : index
    %c0_1 = arith.constant 0 : index
    %c0_2 = arith.constant 0 : index
    %c0_3 = arith.constant 0 : index
    %3 = vector.load %arg2[%c0, %c0_1, %c0_2, %c0_3] : memref<1x3x2x128xf32, #tpu.memory_space<vmem>>, vector<1x3x2x128xf32>
    %4 = vector.shape_cast %3 : vector<1x3x2x128xf32> to vector<3x2x128xf32>
    %c0_4 = arith.constant 0 : index
    %c0_5 = arith.constant 0 : index
    %c0_6 = arith.constant 0 : index
    %c0_7 = arith.constant 0 : index
    %5 = vector.load %arg3[%c0_4, %c0_5, %c0_6, %c0_7] : memref<1x1x2x128xi32, #tpu.memory_space<vmem>>, vector<1x1x2x128xi32>
    %6 = vector.shape_cast %5 : vector<1x1x2x128xi32> to vector<2x128xi32>
    %7 = vector.extract_strided_slice %4 {offsets = [0, 0, 0], sizes = [1, 2, 128], strides = [1, 1, 1]} : vector<3x2x128xf32> to vector<1x2x128xf32>
    %8 = vector.shape_cast %7 : vector<1x2x128xf32> to vector<2x128xf32>
    %9 = vector.extract_strided_slice %4 {offsets = [1, 0, 0], sizes = [1, 2, 128], strides = [1, 1, 1]} : vector<3x2x128xf32> to vector<1x2x128xf32>
    %10 = vector.shape_cast %9 : vector<1x2x128xf32> to vector<2x128xf32>
    %11 = arith.maximumf %8, %10 : vector<2x128xf32>
    %12 = vector.extract_strided_slice %4 {offsets = [2, 0, 0], sizes = [1, 2, 128], strides = [1, 1, 1]} : vector<3x2x128xf32> to vector<1x2x128xf32>
    %13 = vector.shape_cast %12 : vector<1x2x128xf32> to vector<2x128xf32>
    %14 = arith.maximumf %11, %13 : vector<2x128xf32>
    %15 = vector.extract_strided_slice %4 {offsets = [0, 0, 0], sizes = [1, 2, 128], strides = [1, 1, 1]} : vector<3x2x128xf32> to vector<1x2x128xf32>
    %16 = vector.shape_cast %15 : vector<1x2x128xf32> to vector<2x128xf32>
    %17 = arith.subf %16, %14 : vector<2x128xf32>
    %18 = math.exp %17 : vector<2x128xf32>
    %19 = vector.extract_strided_slice %4 {offsets = [1, 0, 0], sizes = [1, 2, 128], strides = [1, 1, 1]} : vector<3x2x128xf32> to vector<1x2x128xf32>
    %20 = vector.shape_cast %19 : vector<1x2x128xf32> to vector<2x128xf32>
    %21 = arith.subf %20, %14 : vector<2x128xf32>
    %22 = math.exp %21 : vector<2x128xf32>
    %23 = arith.addf %18, %22 : vector<2x128xf32>
    %24 = vector.extract_strided_slice %4 {offsets = [2, 0, 0], sizes = [1, 2, 128], strides = [1, 1, 1]} : vector<3x2x128xf32> to vector<1x2x128xf32>
    %25 = vector.shape_cast %24 : vector<1x2x128xf32> to vector<2x128xf32>
    %26 = arith.subf %25, %14 : vector<2x128xf32>
    %27 = math.exp %26 : vector<2x128xf32>
    %28 = arith.addf %23, %27 : vector<2x128xf32>
    %29 = math.log %28 : vector<2x128xf32>
    %30 = arith.addf %14, %29 : vector<2x128xf32>
    %c0_8 = arith.constant 0 : index
    %c0_9 = arith.constant 0 : index
    %c0_10 = arith.constant 0 : index
    %31 = vector.load %arg5[%c0_8, %c0_9, %c0_10] : memref<3x2x128xf32, #tpu.memory_space<vmem>>, vector<1x2x128xf32>
    %32 = vector.shape_cast %31 : vector<1x2x128xf32> to vector<2x128xf32>
    %c0_i32_11 = arith.constant 0 : i32
    %33 = vector.broadcast %c0_i32_11 : i32 to vector<2x128xi32>
    %34 = arith.cmpi eq, %6, %33 : vector<2x128xi32>
    %35 = vector.extract_strided_slice %4 {offsets = [0, 0, 0], sizes = [1, 2, 128], strides = [1, 1, 1]} : vector<3x2x128xf32> to vector<1x2x128xf32>
    %36 = vector.shape_cast %35 : vector<1x2x128xf32> to vector<2x128xf32>
    %37 = arith.subf %30, %36 : vector<2x128xf32>
    %cst = arith.constant 0.000000e+00 : f32
    %38 = vector.broadcast %cst : f32 to vector<2x128xf32>
    %39 = arith.select %34, %37, %38 : vector<2x128xi1>, vector<2x128xf32>
    %40 = arith.addf %32, %39 : vector<2x128xf32>
    %c0_12 = arith.constant 0 : index
    %c0_13 = arith.constant 0 : index
    %c0_14 = arith.constant 0 : index
    %41 = vector.load %arg5[%c0_12, %c0_13, %c0_14] : memref<3x2x128xf32, #tpu.memory_space<vmem>>, vector<1x2x128xf32>
    %42 = vector.shape_cast %41 : vector<1x2x128xf32> to vector<2x128xf32>
    %43 = vector.shape_cast %40 : vector<2x128xf32> to vector<1x2x128xf32>
    tpu.vector_store %arg5[%c0_12, %c0_13, %c0_14], %43 {strides = array<i32>} : memref<3x2x128xf32, #tpu.memory_space<vmem>>, vector<1x2x128xf32>,
    %c1 = arith.constant 1 : index
    %c0_15 = arith.constant 0 : index
    %c0_16 = arith.constant 0 : index
    %44 = vector.load %arg5[%c1, %c0_15, %c0_16] : memref<3x2x128xf32, #tpu.memory_space<vmem>>, vector<1x2x128xf32>
    %45 = vector.shape_cast %44 : vector<1x2x128xf32> to vector<2x128xf32>
    %c1_i32 = arith.constant 1 : i32
    %46 = vector.broadcast %c1_i32 : i32 to vector<2x128xi32>
    %47 = arith.cmpi eq, %6, %46 : vector<2x128xi32>
    %48 = vector.extract_strided_slice %4 {offsets = [1, 0, 0], sizes = [1, 2, 128], strides = [1, 1, 1]} : vector<3x2x128xf32> to vector<1x2x128xf32>
    %49 = vector.shape_cast %48 : vector<1x2x128xf32> to vector<2x128xf32>
    %50 = arith.subf %30, %49 : vector<2x128xf32>
    %cst_17 = arith.constant 0.000000e+00 : f32
    %51 = vector.broadcast %cst_17 : f32 to vector<2x128xf32>
    %52 = arith.select %47, %50, %51 : vector<2x128xi1>, vector<2x128xf32>
    %53 = arith.addf %45, %52 : vector<2x128xf32>
    %c1_18 = arith.constant 1 : index
    %c0_19 = arith.constant 0 : index
    %c0_20 = arith.constant 0 : index
    %54 = vector.load %arg5[%c1_18, %c0_19, %c0_20] : memref<3x2x128xf32, #tpu.memory_space<vmem>>, vector<1x2x128xf32>
    %55 = vector.shape_cast %54 : vector<1x2x128xf32> to vector<2x128xf32>
    %56 = vector.shape_cast %53 : vector<2x128xf32> to vector<1x2x128xf32>
    tpu.vector_store %arg5[%c1_18, %c0_19, %c0_20], %56 {strides = array<i32>} : memref<3x2x128xf32, #tpu.memory_space<vmem>>, vector<1x2x128xf32>,
    %c2 = arith.constant 2 : index
    %c0_21 = arith.constant 0 : index
    %c0_22 = arith.constant 0 : index
    %57 = vector.load %arg5[%c2, %c0_21, %c0_22] : memref<3x2x128xf32, #tpu.memory_space<vmem>>, vector<1x2x128xf32>
    %58 = vector.shape_cast %57 : vector<1x2x128xf32> to vector<2x128xf32>
    %c2_i32 = arith.constant 2 : i32
    %59 = vector.broadcast %c2_i32 : i32 to vector<2x128xi32>
    %60 = arith.cmpi eq, %6, %59 : vector<2x128xi32>
    %61 = vector.extract_strided_slice %4 {offsets = [2, 0, 0], sizes = [1, 2, 128], strides = [1, 1, 1]} : vector<3x2x128xf32> to vector<1x2x128xf32>
    %62 = vector.shape_cast %61 : vector<1x2x128xf32> to vector<2x128xf32>
    %63 = arith.subf %30, %62 : vector<2x128xf32>
    %cst_23 = arith.constant 0.000000e+00 : f32
    %64 = vector.broadcast %cst_23 : f32 to vector<2x128xf32>
    %65 = arith.select %60, %63, %64 : vector<2x128xi1>, vector<2x128xf32>
    %66 = arith.addf %58, %65 : vector<2x128xf32>
    %c2_24 = arith.constant 2 : index
    %c0_25 = arith.constant 0 : index
    %c0_26 = arith.constant 0 : index
    %67 = vector.load %arg5[%c2_24, %c0_25, %c0_26] : memref<3x2x128xf32, #tpu.memory_space<vmem>>, vector<1x2x128xf32>
    %68 = vector.shape_cast %67 : vector<1x2x128xf32> to vector<2x128xf32>
    %69 = vector.shape_cast %66 : vector<2x128xf32> to vector<1x2x128xf32>
    tpu.vector_store %arg5[%c2_24, %c0_25, %c0_26], %69 {strides = array<i32>} : memref<3x2x128xf32, #tpu.memory_space<vmem>>, vector<1x2x128xf32>,
    %c0_i32_27 = arith.constant 0 : i32
    %70 = arith.cmpi eq, %arg1, %c0_i32_27 : i32
    %71 = arith.extui %70 : i1 to i32
    %c0_i32_28 = arith.constant 0 : i32
    %72 = arith.cmpi ne, %71, %c0_i32_28 : i32
    scf.if %72 {
      %c0_29 = arith.constant 0 : index
      %c0_30 = arith.constant 0 : index
      %c0_31 = arith.constant 0 : index
      %73 = vector.load %arg5[%c0_29, %c0_30, %c0_31] : memref<3x2x128xf32, #tpu.memory_space<vmem>>, vector<3x2x128xf32>
      %cst_32 = arith.constant dense<0.000000e+00> : vector<3x128xf32>
      %74 = vector.multi_reduction <add>, %73, %cst_32 [1] : vector<3x2x128xf32> to vector<3x128xf32>
      %c0_33 = arith.constant 0 : index
      %c0_34 = arith.constant 0 : index
      %c0_35 = arith.constant 0 : index
      %75 = vector.load %arg4[%c0_33, %c0_34, %c0_35] : memref<1x3x128xf32, #tpu.memory_space<vmem>>, vector<1x3x128xf32>
      %76 = vector.shape_cast %75 : vector<1x3x128xf32> to vector<3x128xf32>
      %77 = vector.shape_cast %74 : vector<3x128xf32> to vector<1x3x128xf32>
      tpu.vector_store %arg4[%c0_33, %c0_34, %c0_35], %77 {strides = array<i32>} : memref<1x3x128xf32, #tpu.memory_space<vmem>>, vector<1x3x128xf32>,
    } else {
    }
    return
  }
  func.func @transform_0(%arg0: i32, %arg1: i32) -> (i32, i32, i32, i32) {
    %c0_i32 = arith.constant 0 : i32
    %c0_i32_0 = arith.constant 0 : i32
    %c0_i32_1 = arith.constant 0 : i32
    return %arg0, %c0_i32, %arg1, %c0_i32_0 : i32, i32, i32, i32
  }
  func.func @transform_1(%arg0: i32, %arg1: i32) -> (i32, i32, i32, i32) {
    %c0_i32 = arith.constant 0 : i32
    %c0_i32_0 = arith.constant 0 : i32
    %c0_i32_1 = arith.constant 0 : i32
    return %arg0, %c0_i32, %arg1, %c0_i32_0 : i32, i32, i32, i32
  }
  func.func @transform_2(%arg0: i32, %arg1: i32) -> (i32, i32, i32) {
    %c0_i32 = arith.constant 0 : i32
    %c0_i32_0 = arith.constant 0 : i32
    %c0_i32_1 = arith.constant 0 : i32
    return %arg0, %c0_i32, %c0_i32_0 : i32, i32, i32
  }
}

</mosaic_0001>

<llo_original>
// kernel: tpu_custom_call.1
$region0: #{tpu_custom_call.1}
  #allocation0 [shape = 'u32[]', space=smem, size = 0x4, offset = 0x4, fixed_abs, tag = 'smem constant byte address 0x4 - core index']
  #allocation1 [shape = 'u32[144,128]{1,0:T(1,128)}', space=vmem, size = 0x12000, scoped, tag = 'internal scratch']
  #allocation2 [shape = 'f32[3,2,128]{2,1,0:T(2,128)}', space=vmem, size = 0xc00, scoped, tag = 'scratch operand']
  %s0 = inlined_call_operand.hbm [shape: f32[2,3,2,128], index: 0, kind: input, shape index: {}]
  %s1 = inlined_call_operand.hbm [shape: s32[2,1,2,128], index: 1, kind: input, shape index: {}]
  %s2 = inlined_call_operand.vmem [shape: f32[2,3,128], index: 2, kind: output, shape index: {}]
  %s3 = sld [smem:[#allocation0]]
  $region57: #{tpu_custom_call.1} parent=0
    _
  %s5 = ssub.s32 1, %s3
  %s6 = scalar_select 0, %s5, %s3
  $region1: #{tpu_custom_call.1} parent=0
    #allocation3 [shape = 'u8[6144]{0}', space=vmem, size = 0x1800, scoped, tag = 'input window, operand 0']
    #allocation4 [shape = 's32[2]{0}', space=sflag, size = 0x8, scoped, tag = 'scoped memory for tpu_custom_call.1']
    #allocation5 [shape = 'u8[2048]{0}', space=vmem, size = 0x800, scoped, tag = 'input window, operand 1']
    #allocation6 [shape = 's32[2]{0}', space=sflag, size = 0x8, scoped, tag = 'scoped memory for tpu_custom_call.1']
    %7 = vsyncpa [#allocation4], 0
    %s8 = scalar_lea.sflag [#allocation4], 1
    %9 = vsyncpa %s8, 0
    %10 = vsyncpa [#allocation6], 0
    %s11 = scalar_lea.sflag [#allocation6], 1
    %12 = vsyncpa %s11, 0
    loop: start=0, step=1, limit=4
    $region2: #{tpu_custom_call.1} parent=1 // loop_pre_header
      _
    $region3: #{tpu_custom_call.1} parent=1 // loop_header
      %s14 = sphi 0, %s18
      %p15 = scmp.ge.s32.totalorder %s14, 4
      %s21 = sphi 0, %s33
      %s22 = sphi 0, %s29
      %s23 = sphi 0, %s21
      %s24 = sphi 0, %s22
      %s25 = sphi 0, %s23
      %s26 = sphi 0, %s24
      %s38 = sphi 0, %s40
      %s41 = sphi 0, %s38
      %s42 = sphi 0, %s41
      %s58 = sphi 0, %s42
      %s66 = sphi 0, %s68
      %s69 = sphi 0, %s66
      %s70 = sphi 0, %s69
      %s86 = sphi 0, %s70
      %s92 = sphi 0, %s94
      %s95 = sphi 0, %s92
      %s96 = sphi 0, %s95
      %s112 = sphi 0, %s96
    $region4: #{tpu_custom_call.1} parent=1 // loop_header_branch
      %17 = sbr.rel (%p15) target = $region8
    $region5: #{tpu_custom_call.1} parent=1 // loop_body
      %s19 = ssub.s32 %s14, 1
      %s20 = ssub.s32 %s14, 2
      %s27 = sadd.s32 1, %s22
      %p28 = scmp.ge.s32.totalorder %s27, 1
      %s29 = scalar_select %p28, 0, %s27
      %s30 = sadd.s32 1, %s21
      %s31 = scalar_select %p28, %s30, %s21
      %p32 = scmp.ge.s32.totalorder %s31, 2
      %s33 = scalar_select %p32, 0, %s31
      %s34 = ssub.s32 %s21, %s33
      %s35 = ssub.s32 %s22, %s29
      %s36 = sor.u32 %s34, %s35
      %p37 = scmp.eq.s32.totalorder %s36, 0
      %s39 = sadd.s32 %s38, 1
      %s40 = scalar_select %p37, %s38, %s39
      %p43 = pneg %p37
      %p44 = scmp.eq.s32.totalorder %s14, 1
      %p45 = por %p43, %p44
      %p46 = scmp.ne.s32.totalorder %s38, %s41
      %p47 = scmp.eq.s32.totalorder %s14, 0
      %p48 = por %p46, %p47
      %p49 = scmp.ne.s32.totalorder %s38, %s41
      %p50 = scmp.eq.s32.totalorder %s19, 1
      %p51 = por %p49, %p50
      %p52 = scmp.ne.s32.totalorder %s41, %s42
      %p53 = scmp.eq.s32.totalorder %s19, 0
      %p54 = por %p52, %p53
      %p55 = scmp.ne.s32.totalorder %s41, %s42
      %p56 = scmp.eq.s32.totalorder %s20, 1
      %p57 = por %p55, %p56
      %p59 = scmp.ne.s32.totalorder %s42, %s58
      %p60 = scmp.eq.s32.totalorder %s20, 0
      %p61 = por %p59, %p60
      %s62 = ssub.s32 %s21, %s33
      %s63 = ssub.s32 %s22, %s29
      %s64 = sor.u32 %s62, %s63
      %p65 = scmp.eq.s32.totalorder %s64, 0
      %s67 = sadd.s32 %s66, 1
      %s68 = scalar_select %p65, %s66, %s67
      %p71 = pneg %p65
      %p72 = scmp.eq.s32.totalorder %s14, 1
      %p73 = por %p71, %p72
      %p74 = scmp.ne.s32.totalorder %s66, %s69
      %p75 = scmp.eq.s32.totalorder %s14, 0
      %p76 = por %p74, %p75
      %p77 = scmp.ne.s32.totalorder %s66, %s69
      %p78 = scmp.eq.s32.totalorder %s19, 1
      %p79 = por %p77, %p78
      %p80 = scmp.ne.s32.totalorder %s69, %s70
      %p81 = scmp.eq.s32.totalorder %s19, 0
      %p82 = por %p80, %p81
      %p83 = scmp.ne.s32.totalorder %s69, %s70
      %p84 = scmp.eq.s32.totalorder %s20, 1
      %p85 = por %p83, %p84
      %p87 = scmp.ne.s32.totalorder %s70, %s86
      %p88 = scmp.eq.s32.totalorder %s20, 0
      %p89 = por %p87, %p88
      %s90 = ssub.s32 %s21, %s33
      %p91 = scmp.eq.s32.totalorder %s90, 0
      %s93 = sadd.s32 %s92, 1
      %s94 = scalar_select %p91, %s92, %s93
      %p97 = pneg %p91
      %p98 = scmp.eq.s32.totalorder %s14, 1
      %p99 = por %p97, %p98
      %p100 = scmp.ne.s32.totalorder %s92, %s95
      %p101 = scmp.eq.s32.totalorder %s14, 0
      %p102 = por %p100, %p101
      %p103 = scmp.ne.s32.totalorder %s92, %s95
      %p104 = scmp.eq.s32.totalorder %s19, 1
      %p105 = por %p103, %p104
      %p106 = scmp.ne.s32.totalorder %s95, %s96
      %p107 = scmp.eq.s32.totalorder %s19, 0
      %p108 = por %p106, %p107
      %p109 = scmp.ne.s32.totalorder %s95, %s96
      %p110 = scmp.eq.s32.totalorder %s20, 1
      %p111 = por %p109, %p110
      %p113 = scmp.ne.s32.totalorder %s96, %s112
      %p114 = scmp.eq.s32.totalorder %s20, 0
      %p115 = por %p113, %p114
      %p116 = scmp.le.s32.totalorder 1, %s14
      %p117 = scmp.lt.s32.totalorder %s14, 3
      %p118 = pnand %p116, %p117
      %p119 = pneg %p118
      // Predicated region
      $region9: #{tpu_custom_call.1} parent=5 // pred_check
        _
      $region10: #{tpu_custom_call.1} parent=5 // pred_check_branch
        %121 = sbr.rel (%p118) target = $region12
      $region11: #{tpu_custom_call.1} parent=5 // pred_region
        %s122 = ssub.s32 %s14, 1
      $region12: #{tpu_custom_call.1} parent=5 // pred_fallthru
        _
      %p123 = scmp.lt.s32.totalorder %s14, 2
      // Predicated region
      $region13: #{tpu_custom_call.1} parent=5 // pred_check
        %p124 = pneg %p123
      $region14: #{tpu_custom_call.1} parent=5 // pred_check_branch
        %126 = sbr.rel (%p124) target = $region16
      $region15: #{tpu_custom_call.1} parent=5 // pred_region
        // Predicated region
        $region17: #{tpu_custom_call.1} parent=15 // pred_check
          %p127 = pneg %p48
        $region18: #{tpu_custom_call.1} parent=15 // pred_check_branch
          %129 = sbr.rel (%p127) target = $region20
        $region19: #{tpu_custom_call.1} parent=15 // pred_region
          %s130 = sand.u32 %s38, 1
          %s131 = scalar_lea.sflag [#allocation4], %s130
          %s132 = sand.u32 %s38, 1
          %s133 = smul.addr %s132, 6
          %s134 = scalar_lea.vmem [#allocation3], %s133
          %s136 = ssub.s32 96, 96
          %137 = vsyncadd %s131, %s136
          %s138 = smul.addr %s21, 3
          %s139 = sadd.s32 %s22, %s138
          %s140 = smul.addr %s139, 32
          %s141 = scalar_lea.hbm %s0, %s140
          %s142 = sshll.u32 %s134, 4
          %s143 = int_to_ptr.vmem [resolvable:$true] %s142
          %148 = dma.hbm_to_vmem [thread:$0]  %s141, 96, %s143, %s131, 32, 32, 2
        $region20: #{tpu_custom_call.1} parent=15 // pred_fallthru
          _
        // Predicated region
        $region21: #{tpu_custom_call.1} parent=15 // pred_check
          %p149 = pneg %p76
        $region22: #{tpu_custom_call.1} parent=15 // pred_check_branch
          %151 = sbr.rel (%p149) target = $region24
        $region23: #{tpu_custom_call.1} parent=15 // pred_region
          %s152 = sand.u32 %s66, 1
          %s153 = scalar_lea.sflag [#allocation6], %s152
          %s154 = sand.u32 %s66, 1
          %s155 = smul.addr %s154, 2
          %s156 = scalar_lea.vmem [#allocation5], %s155
          %s158 = ssub.s32 32, 32
          %159 = vsyncadd %s153, %s158
          %s160 = sadd.s32 %s22, %s21
          %s161 = smul.addr %s160, 32
          %s162 = scalar_lea.hbm %s1, %s161
          %s164 = sshll.u32 %s156, 4
          %s165 = int_to_ptr.vmem [resolvable:$true] %s164
          %167 = dma.hbm_to_vmem [thread:$0]  %s162, 32, %s165, %s153
        $region24: #{tpu_custom_call.1} parent=15 // pred_fallthru
          _
      $region16: #{tpu_custom_call.1} parent=5 // pred_fallthru
        _
      %p168 = scmp.le.s32.totalorder 1, %s14
      %p169 = scmp.lt.s32.totalorder %s14, 3
      %p170 = pnand %p168, %p169
      %p171 = pneg %p170
      // Predicated region
      $region25: #{tpu_custom_call.1} parent=5 // pred_check
        _
      $region26: #{tpu_custom_call.1} parent=5 // pred_check_branch
        %173 = sbr.rel (%p170) target = $region28
      $region27: #{tpu_custom_call.1} parent=5 // pred_region
        %s174 = ssub.s32 %s14, 1
        %s175 = sand.u32 %s41, 1
        %s176 = scalar_lea.sflag [#allocation4], %s175
        %s177 = sand.u32 %s41, 1
        %s178 = smul.addr %s177, 6
        %s179 = scalar_lea.vmem [#allocation3], %s178
        // Predicated region
        $region29: #{tpu_custom_call.1} parent=27 // pred_check
          %p180 = pneg %p54
        $region30: #{tpu_custom_call.1} parent=27 // pred_check_branch
          %182 = sbr.rel (%p180) target = $region32
        $region31: #{tpu_custom_call.1} parent=27 // pred_region
          %183 = dma.done %s176, 96
        $region32: #{tpu_custom_call.1} parent=27 // pred_fallthru
          _
        %s184 = sand.u32 %s69, 1
        %s185 = scalar_lea.sflag [#allocation6], %s184
        %s186 = sand.u32 %s69, 1
        %s187 = smul.addr %s186, 2
        %s188 = scalar_lea.vmem [#allocation5], %s187
        // Predicated region
        $region33: #{tpu_custom_call.1} parent=27 // pred_check
          %p189 = pneg %p82
        $region34: #{tpu_custom_call.1} parent=27 // pred_check_branch
          %191 = sbr.rel (%p189) target = $region36
        $region35: #{tpu_custom_call.1} parent=27 // pred_region
          %192 = dma.done %s185, 32
        $region36: #{tpu_custom_call.1} parent=27 // pred_fallthru
          _
        %s193 = sand.u32 %s41, 1
        %s194 = scalar_lea.sflag [#allocation4], %s193
        %s195 = sand.u32 %s41, 1
        %s196 = smul.addr %s195, 6
        %s197 = scalar_lea.vmem [#allocation3], %s196
        %p198 = pneg %p54
        %p199 = pneg %p51
        %s200 = sand.u32 %s69, 1
        %s201 = scalar_lea.sflag [#allocation6], %s200
        %s202 = sand.u32 %s69, 1
        %s203 = smul.addr %s202, 2
        %s204 = scalar_lea.vmem [#allocation5], %s203
        %p205 = pneg %p82
        %p206 = pneg %p79
        %p207 = pneg %p108
        %p208 = pneg %p105
        %p209 = scmp.lt.s32.totalorder %s23, 1
        %s210 = scalar_select %p209, %s23, 1
        %s211 = smul.addr %s210, 4
        %s212 = scalar_lea.vmem %s2, %s211
        %p213 = scmp.lt.s32.totalorder %s23, 1
        %s214 = scalar_select %p213, %s23, 1
        %s215 = smul.addr %s214, 4
        %s216 = scalar_lea.vmem %s2, %s215
        %p217 = scmp.eq.s32.totalorder %s24, 0
        // Predicated region
        $region37: #{tpu_custom_call.1} parent=27 // pred_check
          %p218 = pneg %p217
        $region38: #{tpu_custom_call.1} parent=27 // pred_check_branch
          %220 = sbr.rel (%p218) target = $region40
        $region39: #{tpu_custom_call.1} parent=27 // pred_region
          %221 = vst [vmem:[#allocation2] sm:$0x3] 0.0
          %222 = vst [vmem:[#allocation2 + $0x2] sm:$0x3] 0.0
          %223 = vst [vmem:[#allocation2 + $0x4] sm:$0x3] 0.0
        $region40: #{tpu_custom_call.1} parent=27 // pred_fallthru
          _
        %v224 = vld [vmem:[%s179] sm:$0x3]
        %v225 = vld [vmem:[%s179 + $0x2] sm:$0x3]
        %v226 = vld [vmem:[%s179 + $0x4] sm:$0x3]
        %v227 = vld [vmem:[%s188] sm:$0x3]
        %v228 = vmax.f32 %v224, %v225
        %v229 = vmax.f32 %v228, %v226
        %v230 = vsub.f32 %v224, %v229
        %v231 = vmul.f32 %v230, 1.442695
        %v232 = vpow.pop %v231
        %v233 = vsub.f32 %v225, %v229
        %v234 = vmul.f32 %v233, 1.442695
        %v235 = vpow.pop %v234
        %v236 = vadd.f32 %v232, %v235
        %v237 = vsub.f32 %v226, %v229
        %v238 = vmul.f32 %v237, 1.442695
        %v239 = vpow.pop %v238
        %v240 = vadd.f32 %v236, %v239
        %v241 = vlog2.pop %v240
        %v242 = vmul.f32 %v241, 0.6931472
        %v243 = vadd.f32 %v229, %v242
        %v244 = vld [vmem:[#allocation2] sm:$0x3]
        %vm245 = vcmp.eq.s32.totalorder %v227, 0
        %v246 = vsub.f32 %v243, %v224
        %v247 = vsel %vm245, %v246, 0.0
        %v248 = vadd.f32 %v244, %v247
        %249 = vst [vmem:[#allocation2] sm:$0x3] %v248
        %s250 = scalar_lea.vmem [#allocation2], 2
        %v251 = vld [vmem:[%s250] sm:$0x3]
        %vm252 = vcmp.eq.s32.totalorder %v227, 1
        %v253 = vsub.f32 %v243, %v225
        %v254 = vsel %vm252, %v253, 0.0
        %v255 = vadd.f32 %v251, %v254
        %256 = vst [vmem:[%s250] sm:$0x3] %v255
        %s257 = scalar_lea.vmem [#allocation2], 4
        %v258 = vld [vmem:[%s257] sm:$0x3]
        %vm259 = vcmp.eq.s32.totalorder %v227, 2
        %v260 = vsub.f32 %v243, %v226
        %v261 = vsel %vm259, %v260, 0.0
        %v262 = vadd.f32 %v258, %v261
        %263 = vst [vmem:[%s257] sm:$0x3] %v262
        // Predicated region
        $region41: #{tpu_custom_call.1} parent=27 // pred_check
          %p264 = pneg %p217
        $region42: #{tpu_custom_call.1} parent=27 // pred_check_branch
          %266 = sbr.rel (%p264) target = $region44
        $region43: #{tpu_custom_call.1} parent=27 // pred_region
          %v267 = vld [vmem:[#allocation2] sm:$0x3]
          %v268 = vld [vmem:[#allocation2 + $0x2] sm:$0x3]
          %v269 = vld [vmem:[#allocation2 + $0x4] sm:$0x3]
          %vm270 = vcmask 1041408
          %v271 = vsel %vm270, %v267, 0.0
          %v272 = vrot.slane %v271, 4
          %v273 = vadd.f32 %v271, %v272
          %v274 = vrot.slane %v273, 2
          %v275 = vadd.f32 %v273, %v274
          %v276 = vrot.slane %v275, 1
          %v277 = vadd.f32 %v275, %v276
          %v278 = vsel %vm270, %v268, 0.0
          %v279 = vrot.slane %v278, 4
          %v280 = vadd.f32 %v278, %v279
          %v281 = vrot.slane %v280, 2
          %v282 = vadd.f32 %v280, %v281
          %v283 = vrot.slane %v282, 1
          %v284 = vadd.f32 %v282, %v283
          %v285 = vsel %vm270, %v269, 0.0
          %v286 = vrot.slane %v285, 4
          %v287 = vadd.f32 %v285, %v286
          %v288 = vrot.slane %v287, 2
          %v289 = vadd.f32 %v287, %v288
          %v290 = vrot.slane %v289, 1
          %v291 = vadd.f32 %v289, %v290
          %vm295 = vcmask 1041409
          %v296 = vsel %vm295, %v284, %v277
          %vm297 = vcmask 1042434
          %v298 = vsel %vm297, %v291, %v296
          %300 = vst [vmem:[%s216] sm:$0x7] %v298
        $region44: #{tpu_custom_call.1} parent=27 // pred_fallthru
          _
        %p301 = scmp.lt.s32.totalorder %s23, 1
        %s302 = scalar_select %p301, %s23, 1
        %s303 = smul.addr %s302, 4
        %s304 = scalar_lea.vmem %s2, %s303
        // Predicated region
        $region45: #{tpu_custom_call.1} parent=27 // pred_check
          %p305 = pneg %p105
        $region46: #{tpu_custom_call.1} parent=27 // pred_check_branch
          %307 = sbr.rel (%p305) target = $region48
        $region47: #{tpu_custom_call.1} parent=27 // pred_region
          _
        $region48: #{tpu_custom_call.1} parent=27 // pred_fallthru
          _
      $region28: #{tpu_custom_call.1} parent=5 // pred_fallthru
        _
      %p308 = scmp.le.s32.totalorder 2, %s14
      // Predicated region
      $region49: #{tpu_custom_call.1} parent=5 // pred_check
        %p309 = pneg %p308
      $region50: #{tpu_custom_call.1} parent=5 // pred_check_branch
        %311 = sbr.rel (%p309) target = $region52
      $region51: #{tpu_custom_call.1} parent=5 // pred_region
        %s312 = ssub.s32 %s14, 2
        // Predicated region
        $region53: #{tpu_custom_call.1} parent=51 // pred_check
          %p313 = pneg %p111
        $region54: #{tpu_custom_call.1} parent=51 // pred_check_branch
          %315 = sbr.rel (%p313) target = $region56
        $region55: #{tpu_custom_call.1} parent=51 // pred_region
          %p316 = scmp.lt.s32.totalorder %s25, 1
          %s317 = scalar_select %p316, %s25, 1
          %s318 = smul.addr %s317, 4
          %s319 = scalar_lea.vmem %s2, %s318
        $region56: #{tpu_custom_call.1} parent=51 // pred_fallthru
          _
      $region52: #{tpu_custom_call.1} parent=5 // pred_fallthru
        _
    $region6: #{tpu_custom_call.1} parent=1 // loop_footer
      %s18 = sadd.s32 1, %s14
    $region7: #{tpu_custom_call.1} parent=1 // loop_footer_branch
      %13 = sbr.rel target = $region3
    $region8: #{tpu_custom_call.1} parent=1 // loop_exit
      _
    %320 = vsyncpa [#allocation4], 1
    %s321 = scalar_lea.sflag [#allocation4], 1
    %322 = vsyncpa %s321, 1
    %323 = vsyncpa [#allocation6], 1
    %s324 = scalar_lea.sflag [#allocation6], 1
    %325 = vsyncpa %s324, 1

</llo_original>
